<compile_context>
chip_gen: v7x
topology: tpu7x:2x2x1
jax: 0.10.0
libtpu: 0.0.40
codegen_flags: <defaults>
</compile_context>

<pallas_src>
import numpy as np
import jax
import jax.numpy as jnp
from jax.experimental import pallas as pl
from jax.experimental.pallas import tpu as pltpu

BN_EPS = 1e-5
L2_EPS = 1e-8


# ---------------------------------------------------------------------------
# Kernel
# ---------------------------------------------------------------------------
def visual_sa_kernel(local_ref, rawg_ref, w_ref, laff_ref, colp_ref, out_ref):
    tb, r, d = local_ref.shape
    loc = local_ref[...]                                     # (TB, R, D) f32
    g = rawg_ref[...].reshape(tb, d)                         # (TB, D)    f32

    wl = w_ref[0]                                            # (D, D) bf16
    wg = w_ref[1]                                            # (D, D) bf16 (BN folded in)
    l_scale = laff_ref[0]                                    # (R, D) f32
    l_shift = laff_ref[1]                                    # (R, D) f32 (bias + BN shift)
    bg_fold = colp_ref[0:1, :]                               # (1, D) f32
    wc_row = colp_ref[1:2, :]                                # (1, D) f32

    # embedding_local: Linear (bf16 MXU, f32 acc) -> folded BN affine -> tanh
    l_lin = jnp.dot(loc.reshape(tb * r, d).astype(jnp.bfloat16), wl,
                    preferred_element_type=jnp.float32).reshape(tb, r, d)
    l_emb = jnp.tanh(l_lin * l_scale + l_shift)              # (TB, R, D)

    # embedding_global: Linear (bf16 MXU, BN pre-folded) -> tanh
    g_lin = jnp.dot(g.astype(jnp.bfloat16), wg,
                    preferred_element_type=jnp.float32) + bg_fold
    g_emb = jnp.tanh(g_lin)                                  # (TB, D)

    # attention logits: (l_emb ⊙ g_emb) · wc == l_emb · (g_emb ⊙ wc)  (lane reduce, no MXU)
    gwc = (g_emb * wc_row)[:, None, :]                       # (TB, 1, D)
    logits = jnp.sum(l_emb * gwc, axis=-1, keepdims=True)    # (TB, R, 1); bc dropped (shift-inv.)
    logits = logits - jnp.max(logits, axis=1, keepdims=True)
    e = jnp.exp(logits)
    inv_den = pl.reciprocal(jnp.sum(e, axis=1, keepdims=True), approx=True)
    attn = e * inv_den                                       # (TB, R, 1)

    # weighted sum of ORIGINAL local features + l2 normalization (all f32)
    new_g = jnp.sum(attn * loc, axis=1)                      # (TB, D)
    norm = jnp.sqrt(jnp.sum(new_g * new_g, axis=-1, keepdims=True)) + L2_EPS
    out = new_g * pl.reciprocal(norm)                        # exact reciprocal
    out_ref[...] = out.reshape(tb, 1, d).astype(out_ref.dtype)


# ---------------------------------------------------------------------------
# Host-side parameter folding / packing
# ---------------------------------------------------------------------------
def _fold_and_pack(p):
    D = p["wl_t"].shape[0]
    R = p["bnl_w"].shape[0]
    # local branch: per-region BN (eval) -> (R, D) scale/shift, local Linear bias folded in
    s_r = p["bnl_w"] * jax.lax.rsqrt(p["bnl_v"] + BN_EPS)             # (R, 1)
    t_r = p["bnl_b"] - p["bnl_m"] * s_r                               # (R, 1)
    l_scale = jnp.broadcast_to(s_r, (R, D)).astype(jnp.float32)
    l_shift = (p["bl"] * s_r + t_r).astype(jnp.float32)               # (R, D)
    laff = jnp.stack([l_scale, l_shift], axis=0)                      # (2, R, D) f32
    # global branch: per-feature BN (eval) folded into the Linear weight/bias
    s_g = p["bng_w"] * jax.lax.rsqrt(p["bng_v"] + BN_EPS)             # (1, D)
    wg_fold = p["wg_t"] * s_g                                         # scale output columns
    bg_fold = (p["bg"] - p["bng_m"]) * s_g + p["bng_b"]               # (1, D)
    # both DxD weights packed into one bf16 slab (single VMEM-resident operand)
    w_bf16 = jnp.stack([p["wl_t"].astype(jnp.bfloat16),
                        wg_fold.astype(jnp.bfloat16)], axis=0)        # (2, D, D) bf16
    # pack remaining per-column params into one (8, D) slab (rows 0/1 used)
    colp = jnp.zeros((8, D), jnp.float32)
    colp = colp.at[0, :].set(bg_fold[0])
    colp = colp.at[1, :].set(p["wc_t"][:, 0])
    # p["bc"] intentionally dropped: softmax over regions is shift-invariant -> exact.
    return w_bf16, laff, colp


def _choose_tb(B, R):
    """Largest divisor of B keeping ~<=512 MXU rows per step, preferring >=8 grid
    steps so v7x megacore sharding keeps both TensorCores load-balanced."""
    target = max(1, 512 // max(R, 1))
    divs = [d for d in range(1, B + 1) if B % d == 0 and d <= target]
    if not divs:
        return 1
    pref = [d for d in divs if B // d >= 8]
    return max(pref) if pref else max(divs)


# ---------------------------------------------------------------------------
# Wrapper
# ---------------------------------------------------------------------------
def visual_sa(local, raw_global, params, tb=None):
    B, R, D = local.shape
    tb = _choose_tb(B, R) if tb is None else tb
    assert B % tb == 0, "batch-tile must divide batch size"
    rawg3 = raw_global.reshape(B, 1, D)
    w_bf16, laff, colp = _fold_and_pack(params)

    vmem_resident = pl.BlockSpec(memory_space=pltpu.MemorySpace.VMEM)
    in_specs = [
        pl.BlockSpec((tb, R, D), lambda b: (b, 0, 0)),   # local regions (pipelined)
        pl.BlockSpec((tb, 1, D), lambda b: (b, 0, 0)),   # raw_global   (pipelined)
        vmem_resident,                                   # packed bf16 weights (2, D, D)
        vmem_resident,                                   # local BN affine     (2, R, D)
        vmem_resident,                                   # packed column params (8, D)
    ]

    # scoped-VMEM estimate: pipelined blocks are double-buffered, residents are not.
    blk = (tb * R * D + 2 * tb * D) * 4 * 2
    res = w_bf16.size * 2 + (laff.size + colp.size) * 4
    vmem_limit = int(min(48 * 2**20, max(16 * 2**20, 2 * (blk + res))))

    out = pl.pallas_call(
        visual_sa_kernel,
        out_shape=jax.ShapeDtypeStruct((B, 1, D), jnp.float32),
        grid_spec=pltpu.PrefetchScalarGridSpec(
            num_scalar_prefetch=0,
            grid=(B // tb,),
            in_specs=in_specs,
            out_specs=pl.BlockSpec((tb, 1, D), lambda b: (b, 0, 0)),
        ),
        compiler_params=pltpu.CompilerParams(
            dimension_semantics=("parallel",),
            vmem_limit_bytes=vmem_limit,
        ),
    )(local, rawg3, w_bf16, laff, colp)
    return out.reshape(B, D)


# ---------------------------------------------------------------------------
# Parameters (PyTorch-style) and references
# ---------------------------------------------------------------------------
def init_params(key, embed_dim, num_region):
    D, R = embed_dim, num_region
    kwl, kwg, kwc = jax.random.split(key, 3)
    r_lin = float(np.sqrt(6.0) / np.sqrt(D + D))
    r_com = float(np.sqrt(6.0) / np.sqrt(D + 1))
    # Linear weights stored pre-transposed: y = x @ W^T  <=>  x @ wl_t.
    return {
        "wl_t": jax.random.uniform(kwl, (D, D), jnp.float32, -r_lin, r_lin),
        "bl": jnp.zeros((1, D), jnp.float32),
        "bnl_w": jnp.ones((R, 1), jnp.float32),
        "bnl_b": jnp.zeros((R, 1), jnp.float32),
        "bnl_m": jnp.zeros((R, 1), jnp.float32),
        "bnl_v": jnp.ones((R, 1), jnp.float32),
        "wg_t": jax.random.uniform(kwg, (D, D), jnp.float32, -r_lin, r_lin),
        "bg": jnp.zeros((1, D), jnp.float32),
        "bng_w": jnp.ones((1, D), jnp.float32),
        "bng_b": jnp.zeros((1, D), jnp.float32),
        "bng_m": jnp.zeros((1, D), jnp.float32),
        "bng_v": jnp.ones((1, D), jnp.float32),
        "wc_t": jax.random.uniform(kwc, (D, 1), jnp.float32, -r_com, r_com),
        "bc": jnp.zeros((1, 1), jnp.float32),
    }


def reference_forward_f32(local, raw_global, p):
    """Pure-JAX f32 reference reproducing the PyTorch forward (eval mode)."""
    l_lin = jnp.einsum("brd,de->bre", local, p["wl_t"]) + p["bl"][0]
    l_bn = (l_lin - p["bnl_m"].reshape(1, -1, 1)) * p["bnl_w"].reshape(1, -1, 1) \
        / jnp.sqrt(p["bnl_v"].reshape(1, -1, 1) + BN_EPS) + p["bnl_b"].reshape(1, -1, 1)
    l_emb = jnp.tanh(l_bn)
    g_lin = raw_global @ p["wg_t"] + p["bg"][0]
    g_bn = (g_lin - p["bng_m"][0]) * p["bng_w"][0] / jnp.sqrt(p["bng_v"][0] + BN_EPS) + p["bng_b"][0]
    g_emb = jnp.tanh(g_bn)[:, None, :]
    common = l_emb * g_emb
    w = jnp.einsum("brd,do->bro", common, p["wc_t"])[..., 0] + p["bc"][0, 0]
    w = jax.nn.softmax(w, axis=1)
    new_g = jnp.sum(w[..., None] * local, axis=1)
    norm = jnp.sqrt(jnp.sum(new_g**2, axis=-1, keepdims=True)) + L2_EPS
    return new_g / norm


def reference_forward_bf16(local, raw_global, params):
    """Pure-JAX reference using the SAME folded/bf16 parameters the kernel uses
    (tight check of the kernel implementation)."""
    w_bf16, laff, colp = _fold_and_pack(params)
    l_lin = jnp.einsum("brd,de->bre", local.astype(jnp.bfloat16), w_bf16[0],
                       preferred_element_type=jnp.float32)
    l_emb = jnp.tanh(l_lin * laff[0] + laff[1])
    g_lin = jnp.einsum("bd,de->be", raw_global.astype(jnp.bfloat16), w_bf16[1],
                       preferred_element_type=jnp.float32) + colp[0]
    g_emb = jnp.tanh(g_lin)
    logits = jnp.sum(l_emb * (g_emb * colp[1])[:, None, :], axis=-1)
    attn = jax.nn.softmax(logits, axis=1)
    new_g = jnp.sum(attn[..., None] * local, axis=1)
    norm = jnp.sqrt(jnp.sum(new_g * new_g, axis=-1, keepdims=True)) + L2_EPS
    return new_g / norm


# ---------------------------------------------------------------------------
# Test
# ---------------------------------------------------------------------------
if __name__ == "__main__":
    B, R, D = 64, 8, 32            # batch, num_region, embed_dim (small)
    key = jax.random.PRNGKey(0)
    k_loc, k_par = jax.random.split(key)
    local = jax.random.normal(k_loc, (B, R, D), jnp.float32)
    raw_global = jnp.mean(local, axis=1)        # "raw image by averaging regions"
    params = init_params(k_par, D, R)

    out = jax.block_until_ready(visual_sa(local, raw_global, params))
    assert out.shape == (B, D)

    # Tight check: same folded bf16 weights / same math in plain JAX.
    ref_tight = reference_forward_bf16(local, raw_global, params)
    assert np.allclose(np.asarray(out), np.asarray(ref_tight), rtol=2e-4, atol=2e-4)

    # Semantics check vs the exact f32 PyTorch-style forward (bf16-matmul tolerance).
    ref_f32 = reference_forward_f32(local, raw_global, params)
    assert np.allclose(np.asarray(out), np.asarray(ref_f32), rtol=5e-2, atol=1e-2)

    print("KERNEL_OK")
</pallas_src>

<mosaic_0001>
module attributes {stable_mosaic.version = 11 : i64} {
  func.func @visual_sa_kernel(%arg0: i32, %arg1: memref<8x8x32xf32, #tpu.memory_space<vmem>>, %arg2: memref<8x1x32xf32, #tpu.memory_space<vmem>>, %arg3: memref<2x32x32xbf16, #tpu.memory_space<vmem>>, %arg4: memref<2x8x32xf32, #tpu.memory_space<vmem>>, %arg5: memref<8x32xf32, #tpu.memory_space<vmem>>, %arg6: memref<8x1x32xf32, #tpu.memory_space<vmem>>) attributes {dimension_semantics = [#tpu.dimension_semantics<parallel>], iteration_bounds = array<i64: 8>, scalar_prefetch = 0 : i64, scratch_operands = 0 : i64, tpu.core_type = #tpu.core_type<tc>, window_params = [{transform_indices = @transform_0, window_bounds = array<i64: 8, 8, 32>}, {transform_indices = @transform_1, window_bounds = array<i64: 8, 1, 32>}, {pipeline_mode = #tpu.pipeline_mode<synchronous>, transform_indices = @transform_2, window_bounds = array<i64: 2, 32, 32>}, {pipeline_mode = #tpu.pipeline_mode<synchronous>, transform_indices = @transform_3, window_bounds = array<i64: 2, 8, 32>}, {pipeline_mode = #tpu.pipeline_mode<synchronous>, transform_indices = @transform_4, window_bounds = array<i64: 8, 32>}, {transform_indices = @transform_5, window_bounds = array<i64: 8, 1, 32>}]} {
    %c0 = arith.constant 0 : index
    %c0_0 = arith.constant 0 : index
    %c0_1 = arith.constant 0 : index
    %0 = vector.load %arg1[%c0, %c0_0, %c0_1] : memref<8x8x32xf32, #tpu.memory_space<vmem>>, vector<8x8x32xf32>
    %c0_2 = arith.constant 0 : index
    %c0_3 = arith.constant 0 : index
    %c0_4 = arith.constant 0 : index
    %1 = vector.load %arg2[%c0_2, %c0_3, %c0_4] : memref<8x1x32xf32, #tpu.memory_space<vmem>>, vector<8x1x32xf32>
    %2 = vector.shape_cast %1 : vector<8x1x32xf32> to vector<8x32xf32>
    %c0_5 = arith.constant 0 : index
    %c0_6 = arith.constant 0 : index
    %c0_7 = arith.constant 0 : index
    %3 = vector.load %arg3[%c0_5, %c0_6, %c0_7] : memref<2x32x32xbf16, #tpu.memory_space<vmem>>, vector<1x32x32xbf16>
    %4 = vector.shape_cast %3 : vector<1x32x32xbf16> to vector<32x32xbf16>
    %c1 = arith.constant 1 : index
    %c0_8 = arith.constant 0 : index
    %c0_9 = arith.constant 0 : index
    %5 = vector.load %arg3[%c1, %c0_8, %c0_9] : memref<2x32x32xbf16, #tpu.memory_space<vmem>>, vector<1x32x32xbf16>
    %6 = vector.shape_cast %5 : vector<1x32x32xbf16> to vector<32x32xbf16>
    %c0_10 = arith.constant 0 : index
    %c0_11 = arith.constant 0 : index
    %c0_12 = arith.constant 0 : index
    %7 = vector.load %arg4[%c0_10, %c0_11, %c0_12] : memref<2x8x32xf32, #tpu.memory_space<vmem>>, vector<1x8x32xf32>
    %8 = vector.shape_cast %7 : vector<1x8x32xf32> to vector<8x32xf32>
    %c1_13 = arith.constant 1 : index
    %c0_14 = arith.constant 0 : index
    %c0_15 = arith.constant 0 : index
    %9 = vector.load %arg4[%c1_13, %c0_14, %c0_15] : memref<2x8x32xf32, #tpu.memory_space<vmem>>, vector<1x8x32xf32>
    %10 = vector.shape_cast %9 : vector<1x8x32xf32> to vector<8x32xf32>
    %c0_16 = arith.constant 0 : index
    %c0_17 = arith.constant 0 : index
    %11 = vector.load %arg5[%c0_16, %c0_17] : memref<8x32xf32, #tpu.memory_space<vmem>>, vector<1x32xf32>
    %c1_18 = arith.constant 1 : index
    %c0_19 = arith.constant 0 : index
    %12 = vector.load %arg5[%c1_18, %c0_19] : memref<8x32xf32, #tpu.memory_space<vmem>>, vector<1x32xf32>
    %13 = vector.shape_cast %0 : vector<8x8x32xf32> to vector<64x32xf32>
    %14 = arith.truncf %13 : vector<64x32xf32> to vector<64x32xbf16>
    %cst = arith.constant dense<0.000000e+00> : vector<64x32xf32>
    %15 = tpu.matmul %14, %4, %cst {dimension_numbers = #tpu.dot_dimension_numbers<[1], [0], [0], [1], [0, 0, 1, 1], [], []>} : vector<64x32xbf16>, vector<32x32xbf16>, vector<64x32xf32> -> vector<64x32xf32>
    %16 = vector.shape_cast %15 : vector<64x32xf32> to vector<8x8x32xf32>
    %17 = vector.shape_cast %8 : vector<8x32xf32> to vector<1x8x32xf32>
    %18 = vector.broadcast %17 : vector<1x8x32xf32> to vector<8x8x32xf32>
    %19 = arith.mulf %16, %18 : vector<8x8x32xf32>
    %20 = vector.shape_cast %10 : vector<8x32xf32> to vector<1x8x32xf32>
    %21 = vector.broadcast %20 : vector<1x8x32xf32> to vector<8x8x32xf32>
    %22 = arith.addf %19, %21 : vector<8x8x32xf32>
    %23 = math.tanh %22 : vector<8x8x32xf32>
    %24 = arith.truncf %2 : vector<8x32xf32> to vector<8x32xbf16>
    %cst_20 = arith.constant dense<0.000000e+00> : vector<8x32xf32>
    %25 = tpu.matmul %24, %6, %cst_20 {dimension_numbers = #tpu.dot_dimension_numbers<[1], [0], [0], [1], [0, 0, 1, 1], [], []>} : vector<8x32xbf16>, vector<32x32xbf16>, vector<8x32xf32> -> vector<8x32xf32>
    %26 = vector.broadcast %11 : vector<1x32xf32> to vector<8x32xf32>
    %27 = arith.addf %25, %26 : vector<8x32xf32>
    %28 = math.tanh %27 : vector<8x32xf32>
    %29 = vector.broadcast %12 : vector<1x32xf32> to vector<8x32xf32>
    %30 = arith.mulf %28, %29 : vector<8x32xf32>
    %31 = vector.shape_cast %30 : vector<8x32xf32> to vector<8x1x32xf32>
    %32 = vector.broadcast %31 : vector<8x1x32xf32> to vector<8x8x32xf32>
    %33 = arith.mulf %23, %32 : vector<8x8x32xf32>
    %cst_21 = arith.constant dense<0.000000e+00> : vector<8x8xf32>
    %34 = vector.multi_reduction <add>, %33, %cst_21 [2] : vector<8x8x32xf32> to vector<8x8xf32>
    %35 = vector.shape_cast %34 : vector<8x8xf32> to vector<8x8x1xf32>
    %cst_22 = arith.constant dense<0xFF800000> : vector<8x1xf32>
    %36 = vector.multi_reduction <maximumf>, %35, %cst_22 [1] : vector<8x8x1xf32> to vector<8x1xf32>
    %37 = vector.shape_cast %36 : vector<8x1xf32> to vector<8x1x1xf32>
    %38 = vector.broadcast %37 : vector<8x1x1xf32> to vector<8x8x1xf32>
    %39 = arith.subf %35, %38 : vector<8x8x1xf32>
    %40 = math.exp %39 : vector<8x8x1xf32>
    %cst_23 = arith.constant dense<0.000000e+00> : vector<8x1xf32>
    %41 = vector.multi_reduction <add>, %40, %cst_23 [1] : vector<8x8x1xf32> to vector<8x1xf32>
    %42 = vector.shape_cast %41 : vector<8x1xf32> to vector<8x1x1xf32>
    %43 = tpu.reciprocal %42 {approx = true} : vector<8x1x1xf32> -> vector<8x1x1xf32>
    %44 = vector.broadcast %43 : vector<8x1x1xf32> to vector<8x8x1xf32>
    %45 = arith.mulf %40, %44 : vector<8x8x1xf32>
    %46 = vector.broadcast %45 : vector<8x8x1xf32> to vector<8x8x32xf32>
    %47 = arith.mulf %46, %0 : vector<8x8x32xf32>
    %cst_24 = arith.constant dense<0.000000e+00> : vector<8x32xf32>
    %48 = vector.multi_reduction <add>, %47, %cst_24 [1] : vector<8x8x32xf32> to vector<8x32xf32>
    %49 = arith.mulf %48, %48 : vector<8x32xf32>
    %cst_25 = arith.constant dense<0.000000e+00> : vector<8xf32>
    %50 = vector.multi_reduction <add>, %49, %cst_25 [1] : vector<8x32xf32> to vector<8xf32>
    %51 = vector.shape_cast %50 : vector<8xf32> to vector<8x1xf32>
    %52 = math.sqrt %51 : vector<8x1xf32>
    %cst_26 = arith.constant 9.99999993E-9 : f32
    %53 = vector.broadcast %cst_26 : f32 to vector<8x1xf32>
    %54 = arith.addf %52, %53 : vector<8x1xf32>
    %55 = tpu.reciprocal %54 : vector<8x1xf32> -> vector<8x1xf32>
    %56 = vector.broadcast %55 : vector<8x1xf32> to vector<8x32xf32>
    %57 = arith.mulf %48, %56 : vector<8x32xf32>
    %58 = vector.shape_cast %57 : vector<8x32xf32> to vector<8x1x32xf32>
    %c0_27 = arith.constant 0 : index
    %c0_28 = arith.constant 0 : index
    %c0_29 = arith.constant 0 : index
    %59 = vector.load %arg6[%c0_27, %c0_28, %c0_29] : memref<8x1x32xf32, #tpu.memory_space<vmem>>, vector<8x1x32xf32>
    tpu.vector_store %arg6[%c0_27, %c0_28, %c0_29], %58 {strides = array<i32>} : memref<8x1x32xf32, #tpu.memory_space<vmem>>, vector<8x1x32xf32>,
    return
  }
  func.func @transform_0(%arg0: i32) -> (i32, i32, i32) {
    %c0_i32 = arith.constant 0 : i32
    %c0_i32_0 = arith.constant 0 : i32
    %c0_i32_1 = arith.constant 0 : i32
    return %arg0, %c0_i32, %c0_i32_0 : i32, i32, i32
  }
  func.func @transform_1(%arg0: i32) -> (i32, i32, i32) {
    %c0_i32 = arith.constant 0 : i32
    %c0_i32_0 = arith.constant 0 : i32
    %c0_i32_1 = arith.constant 0 : i32
    return %arg0, %c0_i32, %c0_i32_0 : i32, i32, i32
  }
  func.func @transform_2(%arg0: i32) -> (i32, i32, i32) {
    %c0_i32 = arith.constant 0 : i32
    %c0_i32_0 = arith.constant 0 : i32
    %c0_i32_1 = arith.constant 0 : i32
    %c0_i32_2 = arith.constant 0 : i32
    return %c0_i32, %c0_i32_0, %c0_i32_1 : i32, i32, i32
  }
  func.func @transform_3(%arg0: i32) -> (i32, i32, i32) {
    %c0_i32 = arith.constant 0 : i32
    %c0_i32_0 = arith.constant 0 : i32
    %c0_i32_1 = arith.constant 0 : i32
    %c0_i32_2 = arith.constant 0 : i32
    return %c0_i32, %c0_i32_0, %c0_i32_1 : i32, i32, i32
  }
  func.func @transform_4(%arg0: i32) -> (i32, i32) {
    %c0_i32 = arith.constant 0 : i32
    %c0_i32_0 = arith.constant 0 : i32
    %c0_i32_1 = arith.constant 0 : i32
    return %c0_i32, %c0_i32_0 : i32, i32
  }
  func.func @transform_5(%arg0: i32) -> (i32, i32, i32) {
    %c0_i32 = arith.constant 0 : i32
    %c0_i32_0 = arith.constant 0 : i32
    %c0_i32_1 = arith.constant 0 : i32
    return %arg0, %c0_i32, %c0_i32_0 : i32, i32, i32
  }
}

</mosaic_0001>

<llo_original>
// kernel: tpu_custom_call.1
$region0: #{tpu_custom_call.1}
  #allocation0 [shape = 'u32[]', space=smem, size = 0x4, offset = 0x4, fixed_abs, tag = 'smem constant byte address 0x4 - core index']
  #allocation1 [shape = 'u32[144,128]{1,0:T(1,128)}', space=vmem, size = 0x12000, scoped, tag = 'internal scratch']
  %s0 = inlined_call_operand.vmem [shape: f32[64,8,32], index: 0, kind: input, shape index: {}]
  %s1 = inlined_call_operand.vmem [shape: f32[64,1,32], index: 1, kind: input, shape index: {}]
  %s2 = inlined_call_operand.vmem [shape: bf16[2,32,32], index: 2, kind: input, shape index: {}]
  %s3 = inlined_call_operand.vmem [shape: f32[2,8,32], index: 3, kind: input, shape index: {}]
  %s4 = inlined_call_operand.vmem [shape: f32[8,32], index: 4, kind: input, shape index: {}]
  %s5 = inlined_call_operand.vmem [shape: f32[64,1,32], index: 5, kind: output, shape index: {}]
  %s6 = sld [smem:[#allocation0]]
  $region53: #{tpu_custom_call.1} parent=0
    _
  %s8 = ssub.s32 1, %s6
  %s9 = scalar_select 0, %s8, %s6
  loop: start=0, step=1, limit=10
  $region2: #{tpu_custom_call.1} parent=0 // loop_pre_header
    _
  $region3: #{tpu_custom_call.1} parent=0 // loop_header
    %s11 = sphi 0, %s15
    %p12 = scmp.ge.s32.totalorder %s11, 10
    %s21 = sphi 0, %s23
    %s24 = sphi 0, %s21
    %s25 = sphi 0, %s24
    %s41 = sphi 0, %s25
    %s47 = sphi 0, %s49
    %s50 = sphi 0, %s47
    %s51 = sphi 0, %s50
    %s67 = sphi 0, %s51
    %s71 = sphi 0, %s71
    %s73 = sphi 0, %s71
    %s74 = sphi 0, %s73
    %s88 = sphi 0, %s74
    %s92 = sphi 0, %s92
    %s94 = sphi 0, %s92
    %s95 = sphi 0, %s94
    %s109 = sphi 0, %s95
    %s113 = sphi 0, %s113
    %s115 = sphi 0, %s113
    %s116 = sphi 0, %s115
    %s130 = sphi 0, %s116
    %s136 = sphi 0, %s138
    %s139 = sphi 0, %s136
    %s140 = sphi 0, %s139
    %s156 = sphi 0, %s140
  $region4: #{tpu_custom_call.1} parent=0 // loop_header_branch
    %14 = sbr.rel (%p12) target = $region8
  $region5: #{tpu_custom_call.1} parent=0 // loop_body
    %s16 = ssub.s32 %s11, 1
    %s17 = ssub.s32 %s11, 2
    %s18 = sadd.s32 %s11, 1
    %s19 = ssub.s32 %s11, %s18
    %p20 = scmp.eq.s32.totalorder %s19, 0
    %s22 = sadd.s32 %s21, 1
    %s23 = scalar_select %p20, %s21, %s22
    %p26 = pneg %p20
    %p27 = scmp.eq.s32.totalorder %s11, 7
    %p28 = por %p26, %p27
    %p29 = scmp.ne.s32.totalorder %s21, %s24
    %p30 = scmp.eq.s32.totalorder %s11, 0
    %p31 = por %p29, %p30
    %p32 = scmp.ne.s32.totalorder %s21, %s24
    %p33 = scmp.eq.s32.totalorder %s16, 7
    %p34 = por %p32, %p33
    %p35 = scmp.ne.s32.totalorder %s24, %s25
    %p36 = scmp.eq.s32.totalorder %s16, 0
    %p37 = por %p35, %p36
    %p38 = scmp.ne.s32.totalorder %s24, %s25
    %p39 = scmp.eq.s32.totalorder %s17, 7
    %p40 = por %p38, %p39
    %p42 = scmp.ne.s32.totalorder %s25, %s41
    %p43 = scmp.eq.s32.totalorder %s17, 0
    %p44 = por %p42, %p43
    %s45 = ssub.s32 %s11, %s18
    %p46 = scmp.eq.s32.totalorder %s45, 0
    %s48 = sadd.s32 %s47, 1
    %s49 = scalar_select %p46, %s47, %s48
    %p52 = pneg %p46
    %p53 = scmp.eq.s32.totalorder %s11, 7
    %p54 = por %p52, %p53
    %p55 = scmp.ne.s32.totalorder %s47, %s50
    %p56 = scmp.eq.s32.totalorder %s11, 0
    %p57 = por %p55, %p56
    %p58 = scmp.ne.s32.totalorder %s47, %s50
    %p59 = scmp.eq.s32.totalorder %s16, 7
    %p60 = por %p58, %p59
    %p61 = scmp.ne.s32.totalorder %s50, %s51
    %p62 = scmp.eq.s32.totalorder %s16, 0
    %p63 = por %p61, %p62
    %p64 = scmp.ne.s32.totalorder %s50, %s51
    %p65 = scmp.eq.s32.totalorder %s17, 7
    %p66 = por %p64, %p65
    %p68 = scmp.ne.s32.totalorder %s51, %s67
    %p69 = scmp.eq.s32.totalorder %s17, 0
    %p70 = por %p68, %p69
    %s72 = sadd.s32 %s71, 1
    %p75 = scmp.eq.s32.totalorder %s11, 7
    %p76 = scmp.ne.s32.totalorder %s71, %s73
    %p77 = scmp.eq.s32.totalorder %s11, 0
    %p78 = por %p76, %p77
    %p79 = scmp.ne.s32.totalorder %s71, %s73
    %p80 = scmp.eq.s32.totalorder %s16, 7
    %p81 = por %p79, %p80
    %p82 = scmp.ne.s32.totalorder %s73, %s74
    %p83 = scmp.eq.s32.totalorder %s16, 0
    %p84 = por %p82, %p83
    %p85 = scmp.ne.s32.totalorder %s73, %s74
    %p86 = scmp.eq.s32.totalorder %s17, 7
    %p87 = por %p85, %p86
    %p89 = scmp.ne.s32.totalorder %s74, %s88
    %p90 = scmp.eq.s32.totalorder %s17, 0
    %p91 = por %p89, %p90
    %s93 = sadd.s32 %s92, 1
    %p96 = scmp.eq.s32.totalorder %s11, 7
    %p97 = scmp.ne.s32.totalorder %s92, %s94
    %p98 = scmp.eq.s32.totalorder %s11, 0
    %p99 = por %p97, %p98
    %p100 = scmp.ne.s32.totalorder %s92, %s94
    %p101 = scmp.eq.s32.totalorder %s16, 7
    %p102 = por %p100, %p101
    %p103 = scmp.ne.s32.totalorder %s94, %s95
    %p104 = scmp.eq.s32.totalorder %s16, 0
    %p105 = por %p103, %p104
    %p106 = scmp.ne.s32.totalorder %s94, %s95
    %p107 = scmp.eq.s32.totalorder %s17, 7
    %p108 = por %p106, %p107
    %p110 = scmp.ne.s32.totalorder %s95, %s109
    %p111 = scmp.eq.s32.totalorder %s17, 0
    %p112 = por %p110, %p111
    %s114 = sadd.s32 %s113, 1
    %p117 = scmp.eq.s32.totalorder %s11, 7
    %p118 = scmp.ne.s32.totalorder %s113, %s115
    %p119 = scmp.eq.s32.totalorder %s11, 0
    %p120 = por %p118, %p119
    %p121 = scmp.ne.s32.totalorder %s113, %s115
    %p122 = scmp.eq.s32.totalorder %s16, 7
    %p123 = por %p121, %p122
    %p124 = scmp.ne.s32.totalorder %s115, %s116
    %p125 = scmp.eq.s32.totalorder %s16, 0
    %p126 = por %p124, %p125
    %p127 = scmp.ne.s32.totalorder %s115, %s116
    %p128 = scmp.eq.s32.totalorder %s17, 7
    %p129 = por %p127, %p128
    %p131 = scmp.ne.s32.totalorder %s116, %s130
    %p132 = scmp.eq.s32.totalorder %s17, 0
    %p133 = por %p131, %p132
    %s134 = ssub.s32 %s11, %s18
    %p135 = scmp.eq.s32.totalorder %s134, 0
    %s137 = sadd.s32 %s136, 1
    %s138 = scalar_select %p135, %s136, %s137
    %p141 = pneg %p135
    %p142 = scmp.eq.s32.totalorder %s11, 7
    %p143 = por %p141, %p142
    %p144 = scmp.ne.s32.totalorder %s136, %s139
    %p145 = scmp.eq.s32.totalorder %s11, 0
    %p146 = por %p144, %p145
    %p147 = scmp.ne.s32.totalorder %s136, %s139
    %p148 = scmp.eq.s32.totalorder %s16, 7
    %p149 = por %p147, %p148
    %p150 = scmp.ne.s32.totalorder %s139, %s140
    %p151 = scmp.eq.s32.totalorder %s16, 0
    %p152 = por %p150, %p151
    %p153 = scmp.ne.s32.totalorder %s139, %s140
    %p154 = scmp.eq.s32.totalorder %s17, 7
    %p155 = por %p153, %p154
    %p157 = scmp.ne.s32.totalorder %s140, %s156
    %p158 = scmp.eq.s32.totalorder %s17, 0
    %p159 = por %p157, %p158
    %p160 = scmp.le.s32.totalorder 1, %s11
    %p161 = scmp.lt.s32.totalorder %s11, 9
    %p162 = pnand %p160, %p161
    %p163 = pneg %p162
    // Predicated region
    $region9: #{tpu_custom_call.1} parent=5 // pred_check
      _
    $region10: #{tpu_custom_call.1} parent=5 // pred_check_branch
      %165 = sbr.rel (%p162) target = $region12
    $region11: #{tpu_custom_call.1} parent=5 // pred_region
      %s166 = ssub.s32 %s11, 1
      // Predicated region
      $region13: #{tpu_custom_call.1} parent=11 // pred_check
        %p167 = pneg %p84
      $region14: #{tpu_custom_call.1} parent=11 // pred_check_branch
        %169 = sbr.rel (%p167) target = $region16
      $region15: #{tpu_custom_call.1} parent=11 // pred_region
        _
      $region16: #{tpu_custom_call.1} parent=11 // pred_fallthru
        _
      // Predicated region
      $region17: #{tpu_custom_call.1} parent=11 // pred_check
        %p170 = pneg %p105
      $region18: #{tpu_custom_call.1} parent=11 // pred_check_branch
        %172 = sbr.rel (%p170) target = $region20
      $region19: #{tpu_custom_call.1} parent=11 // pred_region
        _
      $region20: #{tpu_custom_call.1} parent=11 // pred_fallthru
        _
      // Predicated region
      $region21: #{tpu_custom_call.1} parent=11 // pred_check
        %p173 = pneg %p126
      $region22: #{tpu_custom_call.1} parent=11 // pred_check_branch
        %175 = sbr.rel (%p173) target = $region24
      $region23: #{tpu_custom_call.1} parent=11 // pred_region
        _
      $region24: #{tpu_custom_call.1} parent=11 // pred_fallthru
        _
    $region12: #{tpu_custom_call.1} parent=5 // pred_fallthru
      _
    %p176 = scmp.lt.s32.totalorder %s11, 8
    // Predicated region
    $region25: #{tpu_custom_call.1} parent=5 // pred_check
      %p177 = pneg %p176
    $region26: #{tpu_custom_call.1} parent=5 // pred_check_branch
      %179 = sbr.rel (%p177) target = $region28
    $region27: #{tpu_custom_call.1} parent=5 // pred_region
      // Predicated region
      $region29: #{tpu_custom_call.1} parent=27 // pred_check
        %p180 = pneg %p31
      $region30: #{tpu_custom_call.1} parent=27 // pred_check_branch
        %182 = sbr.rel (%p180) target = $region32
      $region31: #{tpu_custom_call.1} parent=27 // pred_region
        %s183 = smul.u32 8, %s11
        %p184 = scmp.lt.s32.totalorder %s183, 63
        %s185 = scalar_select %p184, %s183, 63
        %s186 = smul.addr %s185, 8
        %s187 = scalar_lea.vmem %s0, %s186
        %s188 = smul.u32 8, %s11
      $region32: #{tpu_custom_call.1} parent=27 // pred_fallthru
        _
      // Predicated region
      $region33: #{tpu_custom_call.1} parent=27 // pred_check
        %p189 = pneg %p57
      $region34: #{tpu_custom_call.1} parent=27 // pred_check_branch
        %191 = sbr.rel (%p189) target = $region36
      $region35: #{tpu_custom_call.1} parent=27 // pred_region
        %s192 = smul.u32 8, %s11
        %p193 = scmp.lt.s32.totalorder %s192, 63
        %s194 = scalar_select %p193, %s192, 63
        %s195 = scalar_lea.vmem %s1, %s194
        %s196 = smul.u32 8, %s11
      $region36: #{tpu_custom_call.1} parent=27 // pred_fallthru
        _
    $region28: #{tpu_custom_call.1} parent=5 // pred_fallthru
      _
    %p197 = scmp.le.s32.totalorder 1, %s11
    %p198 = scmp.lt.s32.totalorder %s11, 9
    %p199 = pnand %p197, %p198
    %p200 = pneg %p199
    // Predicated region
    $region37: #{tpu_custom_call.1} parent=5 // pred_check
      _
    $region38: #{tpu_custom_call.1} parent=5 // pred_check_branch
      %202 = sbr.rel (%p199) target = $region40
    $region39: #{tpu_custom_call.1} parent=5 // pred_region
      %s203 = ssub.s32 %s11, 1
      %s204 = smul.u32 8, %s16
      %p205 = scmp.lt.s32.totalorder %s204, 63
      %s206 = scalar_select %p205, %s204, 63
      %s207 = smul.addr %s206, 8
      %s208 = scalar_lea.vmem %s0, %s207
      %p209 = pneg %p37
      %p210 = pneg %p34
      %s211 = smul.u32 8, %s16
      %p212 = scmp.lt.s32.totalorder %s211, 63
      %s213 = scalar_select %p212, %s211, 63
      %s214 = scalar_lea.vmem %s1, %s213
      %p215 = pneg %p63
      %p216 = pneg %p60
      %p217 = pneg %p84
      %p218 = pneg %p81
      %p219 = pneg %p105
      %p220 = pneg %p102
      %p221 = pneg %p126
      %p222 = pneg %p123
      %p223 = pneg %p152
      %p224 = pneg %p149
      %s225 = smul.u32 8, %s16
      %p226 = scmp.lt.s32.totalorder %s225, 63
      %s227 = scalar_select %p226, %s225, 63
      %s228 = scalar_lea.vmem %s5, %s227
      %s229 = smul.u32 8, %s16
      %p230 = scmp.lt.s32.totalorder %s229, 63
      %s231 = scalar_select %p230, %s229, 63
      %s232 = smul.addr %s231, 8
      %s233 = scalar_lea.vmem %s0, %s232
      %s234 = smul.u32 8, %s16
      %s235 = smul.u32 8, %s16
      %p236 = scmp.lt.s32.totalorder %s235, 63
      %s237 = scalar_select %p236, %s235, 63
      %s238 = scalar_lea.vmem %s1, %s237
      %s239 = smul.u32 8, %s16
      %s240 = smul.u32 8, %s16
      %p241 = scmp.lt.s32.totalorder %s240, 63
      %s242 = scalar_select %p241, %s240, 63
      %s243 = scalar_lea.vmem %s5, %s242
      %s244 = smul.u32 8, %s16
      %v246 = vld [vmem:[%s233] sm:$0xff]
      %v247 = vld [vmem:[%s233 + $0x8] sm:$0xff]
      %v248 = vld [vmem:[%s233 + $0x10] sm:$0xff]
      %v249 = vld [vmem:[%s233 + $0x18] sm:$0xff]
      %v250 = vld [vmem:[%s233 + $0x20] sm:$0xff]
      %v251 = vld [vmem:[%s233 + $0x28] sm:$0xff]
      %v252 = vld [vmem:[%s233 + $0x30] sm:$0xff]
      %v253 = vld [vmem:[%s233 + $0x38] sm:$0xff]
      %v254 = vld [vmem:[%s238] sm:$0x1]
      %v255 = vld [vmem:[%s238 + $0x1] sm:$0x1]
      %v256 = vld [vmem:[%s238 + $0x2] sm:$0x1]
      %v257 = vld [vmem:[%s238 + $0x3] sm:$0x1]
      %v258 = vld [vmem:[%s238 + $0x4] sm:$0x1]
      %v259 = vld [vmem:[%s238 + $0x5] sm:$0x1]
      %v260 = vld [vmem:[%s238 + $0x6] sm:$0x1]
      %v261 = vld [vmem:[%s238 + $0x7] sm:$0x1]
      %v262 = vld [vmem:[%s2] sm:$0xf]
      %v263 = vld [vmem:[%s2 + $0x4] sm:$0xf]
      %v264 = vld [vmem:[%s2 + $0x8] sm:$0xf]
      %v265 = vld [vmem:[%s2 + $0xc] sm:$0xf]
      %s266 = scalar_lea.vmem %s2, 16
      %v267 = vld [vmem:[%s266] sm:$0xf]
      %v268 = vld [vmem:[%s266 + $0x4] sm:$0xf]
      %v269 = vld [vmem:[%s266 + $0x8] sm:$0xf]
      %v270 = vld [vmem:[%s266 + $0xc] sm:$0xf]
      %v271 = vld [vmem:[%s3] sm:$0xff]
      %s272 = scalar_lea.vmem %s3, 8
      %v273 = vld [vmem:[%s272] sm:$0xff]
      %v274 = vld [vmem:[%s4] sm:$0x1]
      %v275 = vld [vmem:[%s4 + $0x1] sm:$0x1]
      %v276 = vpack.c.bf16 %v247, %v246
      %v277 = vpack.c.bf16 %v249, %v248
      %v278 = vpack.c.bf16 %v251, %v250
      %v279 = vpack.c.bf16 %v253, %v252
      %v284 = vunpack.c.l.b16 %v262
      %v285 = vunpack.c.l.b16 %v263
      %v286 = vunpack.c.l.b16 %v264
      %v287 = vunpack.c.l.b16 %v265
      %v288 = vpack.c.b16 %v285, %v284
      %v289 = vpack.c.b16 %v287, %v286
      %vm292 = vcmask 261120
      %v294 = vsel %vm292, %v276, 0
      %v297 = vsel %vm292, %v277, 0
      %v300 = vsel %vm292, %v278, 0
      %v303 = vsel %vm292, %v279, 0
      %305 = vmatprep.subr.bf16.mxu0 0
      %306 = vmatpush1.bf16.msra.mxu0 %v288
      %307 = vmatprep.subr.bf16.mxu0 0
      %308 = vmatpush1.bf16.msra.mxu0 %v289
      %309 = vmatprep.subr.bf16.mxu0 0
      %310 = vmatpush1.bf16.msra.mxu0 0
      %311 = vmatprep.subr.bf16.mxu0 0
      %312 = vmatpush1.bf16.msra.mxu0 0
      %313 = vmatprep.subr.bf16.mxu0 0
      %314 = vmatpush1.bf16.msra.mxu0 0
      %315 = vmatprep.subr.bf16.mxu0 0
      %316 = vmatpush1.bf16.msra.mxu0 0
      %317 = vmatprep.subr.bf16.mxu0 0
      %318 = vmatpush1.bf16.msra.mxu0 0
      %319 = vmatprep.subr.bf16.mxu0 0
      %320 = vmatpush1.bf16.msra.mxu0 0
      %321 = vmatprep.subr.bf16.mxu0 0
      %322 = vmatpush1.bf16.msra.mxu0 0
      %323 = vmatprep.subr.bf16.mxu0 0
      %324 = vmatpush1.bf16.msra.mxu0 0
      %325 = vmatprep.subr.bf16.mxu0 0
      %326 = vmatpush1.bf16.msra.mxu0 0
      %327 = vmatprep.subr.bf16.mxu0 0
      %328 = vmatpush1.bf16.msra.mxu0 0
      %329 = vmatprep.subr.bf16.mxu0 0
      %330 = vmatpush1.bf16.msra.mxu0 0
      %331 = vmatprep.subr.bf16.mxu0 0
      %332 = vmatpush1.bf16.msra.mxu0 0
      %333 = vmatprep.subr.bf16.mxu0 0
      %334 = vmatpush1.bf16.msra.mxu0 0
      %335 = vmatprep.subr.bf16.mxu0 0
      %336 = vmatpush1.bf16.msra.mxu0 0
      %337 = vmatprep.mubr.bf16.mxu0 0
      %338 = vmatmul.mubr.bf16.gmra.mrb[0].mxu0 %v294
      %v339 = vpop.f32.mrb[0].mxu0
      %v340 = vadd.f32 0.0, %v339
      %v341 = vpop.f32.mrb[0].mxu0
      %v342 = vpop.f32.mrb[0].mxu0
      %v343 = vadd.f32 0.0, %v342
      %v344 = vpop.f32.mrb[0].mxu0
      %345 = vmatprep.mubr.bf16.mxu0 0
      %346 = vmatmul.mubr.bf16.gmra.mrb[0].mxu0 %v297
      %v347 = vpop.f32.mrb[0].mxu0
      %v348 = vadd.f32 0.0, %v347
      %v349 = vpop.f32.mrb[0].mxu0
      %v350 = vpop.f32.mrb[0].mxu0
      %v351 = vadd.f32 0.0, %v350
      %v352 = vpop.f32.mrb[0].mxu0
      %353 = vmatprep.mubr.bf16.mxu0 0
      %354 = vmatmul.mubr.bf16.gmra.mrb[0].mxu0 %v300
      %v355 = vpop.f32.mrb[0].mxu0
      %v356 = vadd.f32 0.0, %v355
      %v357 = vpop.f32.mrb[0].mxu0
      %v358 = vpop.f32.mrb[0].mxu0
      %v359 = vadd.f32 0.0, %v358
      %v360 = vpop.f32.mrb[0].mxu0
      %361 = vmatprep.mubr.bf16.mxu0 0
      %362 = vmatmul.mubr.bf16.gmra.mrb[0].mxu0 %v303
      %v363 = vpop.f32.mrb[0].mxu0
      %v364 = vadd.f32 0.0, %v363
      %v365 = vpop.f32.mrb[0].mxu0
      %v366 = vpop.f32.mrb[0].mxu0
      %v367 = vadd.f32 0.0, %v366
      %v368 = vpop.f32.mrb[0].mxu0
      %369 = vdwg.mxu0
      %v370 = vmul.f32 %v340, %v271
      %v371 = vmul.f32 %v343, %v271
      %v372 = vmul.f32 %v348, %v271
      %v373 = vmul.f32 %v351, %v271
      %v374 = vmul.f32 %v356, %v271
      %v375 = vmul.f32 %v359, %v271
      %v376 = vmul.f32 %v364, %v271
      %v377 = vmul.f32 %v367, %v271
      %v378 = vadd.f32 %v370, %v273
      %v379 = vadd.f32 %v371, %v273
      %v380 = vadd.f32 %v372, %v273
      %v381 = vadd.f32 %v373, %v273
      %v382 = vadd.f32 %v374, %v273
      %v383 = vadd.f32 %v375, %v273
      %v384 = vadd.f32 %v376, %v273
      %v385 = vadd.f32 %v377, %v273
      %v386 = vtanh.pop %v378
      %v387 = vtanh.pop %v379
      %v388 = vtanh.pop %v380
      %v389 = vtanh.pop %v381
      %v390 = vtanh.pop %v382
      %v391 = vtanh.pop %v383
      %v392 = vtanh.pop %v384
      %v393 = vtanh.pop %v385
      %v394 = vpack.c.bf16 %v254, %v254
      %v395 = vpack.c.bf16 %v255, %v255
      %v396 = vpack.c.bf16 %v256, %v256
      %v397 = vpack.c.bf16 %v257, %v257
      %v398 = vpack.c.bf16 %v258, %v258
      %v399 = vpack.c.bf16 %v259, %v259
      %v400 = vpack.c.bf16 %v260, %v260
      %v401 = vpack.c.bf16 %v261, %v261
      %v402 = vlaneseq
      %v403 = vshrl.u32 %v402, 7
      %v404 = vsub.s32 0, %v403
      %v405 = vrot.slane %v274, %v404
      %v414 = vunpack.c.l.b16 %v394
      %v415 = vunpack.c.l.b16 %v395
      %v416 = vunpack.c.l.b16 %v396
      %v417 = vunpack.c.l.b16 %v397
      %v418 = vunpack.c.l.b16 %v398
      %v419 = vunpack.c.l.b16 %v399
      %v420 = vunpack.c.l.b16 %v400
      %v421 = vunpack.c.l.b16 %v401
      %v422 = vrot.slane %v415, 7
      %vm423 = vcmask 1041409
      %v424 = vsel %vm423, %v422, %v414
      %v425 = vrot.slane %v416, 6
      %vm426 = vcmask 1042434
      %v427 = vsel %vm426, %v425, %v424
      %v428 = vrot.slane %v417, 5
      %vm429 = vcmask 1043459
      %v430 = vsel %vm429, %v428, %v427
      %v431 = vrot.slane %v418, 4
      %vm432 = vcmask 1044484
      %v433 = vsel %vm432, %v431, %v430
      %v434 = vrot.slane %v419, 3
      %vm435 = vcmask 1045509
      %v436 = vsel %vm435, %v434, %v433
      %v437 = vrot.slane %v420, 2
      %vm438 = vcmask 1046534
      %v439 = vsel %vm438, %v437, %v436
      %v440 = vrot.slane %v421, 1
      %vm441 = vcmask 1047559
      %v442 = vsel %vm441, %v440, %v439
      %v443 = vpack.c.b16 %v442, %v442
      %v448 = vunpack.c.l.b16 %v267
      %v449 = vunpack.c.l.b16 %v268
      %v450 = vunpack.c.l.b16 %v269
      %v451 = vunpack.c.l.b16 %v270
      %v452 = vpack.c.b16 %v449, %v448
      %v453 = vpack.c.b16 %v451, %v450
      %v457 = vsel %vm292, %v443, 0
      %459 = vmatprep.subr.bf16.mxu0 0
      %460 = vmatpush1.bf16.msra.mxu0 %v452
      %461 = vmatprep.subr.bf16.mxu0 0
      %462 = vmatpush1.bf16.msra.mxu0 %v453
      %463 = vmatprep.subr.bf16.mxu0 0
      %464 = vmatpush1.bf16.msra.mxu0 0
      %465 = vmatprep.subr.bf16.mxu0 0
      %466 = vmatpush1.bf16.msra.mxu0 0
      %467 = vmatprep.subr.bf16.mxu0 0
      %468 = vmatpush1.bf16.msra.mxu0 0
      %469 = vmatprep.subr.bf16.mxu0 0
      %470 = vmatpush1.bf16.msra.mxu0 0
      %471 = vmatprep.subr.bf16.mxu0 0
      %472 = vmatpush1.bf16.msra.mxu0 0
      %473 = vmatprep.subr.bf16.mxu0 0
      %474 = vmatpush1.bf16.msra.mxu0 0
      %475 = vmatprep.subr.bf16.mxu0 0
      %476 = vmatpush1.bf16.msra.mxu0 0
      %477 = vmatprep.subr.bf16.mxu0 0
      %478 = vmatpush1.bf16.msra.mxu0 0
      %479 = vmatprep.subr.bf16.mxu0 0
      %480 = vmatpush1.bf16.msra.mxu0 0
      %481 = vmatprep.subr.bf16.mxu0 0
      %482 = vmatpush1.bf16.msra.mxu0 0
      %483 = vmatprep.subr.bf16.mxu0 0
      %484 = vmatpush1.bf16.msra.mxu0 0
      %485 = vmatprep.subr.bf16.mxu0 0
      %486 = vmatpush1.bf16.msra.mxu0 0
      %487 = vmatprep.subr.bf16.mxu0 0
      %488 = vmatpush1.bf16.msra.mxu0 0
      %489 = vmatprep.subr.bf16.mxu0 0
      %490 = vmatpush1.bf16.msra.mxu0 0
      %491 = vmatprep.mubr.bf16.mxu0 0
      %492 = vmatmul.mubr.bf16.gmra.mrb[0].mxu0 %v457
      %v493 = vpop.f32.mrb[0].mxu0
      %v494 = vadd.f32 %v405, %v493
      %v495 = vpop.f32.mrb[0].mxu0
      %v496 = vpop.f32.mrb[0].mxu0
      %v497 = vpop.f32.mrb[0].mxu0
      %498 = vdwg.mxu0
      %v499 = vtanh.pop %v494
      %v500 = vlaneseq
      %v501 = vshrl.u32 %v500, 7
      %v502 = vsub.s32 0, %v501
      %v503 = vrot.slane %v275, %v502
      %v504 = vmul.f32 %v499, %v503
      %v506 = vcombine.high %v504, %v504
      %v508 = vunpack.c.l.s4 1966171168
      %v509 = vunpack.c.0.s8 %v508
      %v510 = vlaneseq
      %v511 = vshrl.u32 %v510, 7
      %v512 = vsub.s32 %v509, %v511
      %v513 = vrot.slane %v504, %v512
      %v515 = vunpack.c.l.s4 1966171168
      %v516 = vunpack.c.0.s8 %v515
      %v517 = vlaneseq
      %v518 = vshrl.u32 %v517, 7
      %v519 = vsub.s32 %v516, %v518
      %v520 = vrot.slane %v506, %v519
      %v521 = vcombine.high %v513, %v513
      %v522 = vcombine.high %v520, %v520
      %v524 = vunpack.c.l.s4 1966171168
      %v525 = vunpack.c.0.s8 %v524
      %v526 = vlaneseq
      %v527 = vshrl.u32 %v526, 7
      %v528 = vsub.s32 %v525, %v527
      %v529 = vrot.slane %v513, %v528
      %v531 = vunpack.c.l.s4 1966171168
      %v532 = vunpack.c.0.s8 %v531
      %v533 = vlaneseq
      %v534 = vshrl.u32 %v533, 7
      %v535 = vsub.s32 %v532, %v534
      %v536 = vrot.slane %v520, %v535
      %v538 = vunpack.c.l.s4 1966171168
      %v539 = vunpack.c.0.s8 %v538
      %v540 = vlaneseq
      %v541 = vshrl.u32 %v540, 7
      %v542 = vsub.s32 %v539, %v541
      %v543 = vrot.slane %v521, %v542
      %v545 = vunpack.c.l.s4 1966171168
      %v546 = vunpack.c.0.s8 %v545
      %v547 = vlaneseq
      %v548 = vshrl.u32 %v547, 7
      %v549 = vsub.s32 %v546, %v548
      %v550 = vrot.slane %v522, %v549
      %v551 = vcombine.high %v529, %v529
      %v552 = vcombine.high %v536, %v536
      %v553 = vcombine.high %v543, %v543
      %v554 = vcombine.high %v550, %v550
      %v555 = vlaneseq
      %v556 = vshrl.u32 %v555, 7
      %v557 = vsub.s32 0, %v556
      %v558 = vrot.slane %v529, %v557
      %v559 = vlaneseq
      %v560 = vshrl.u32 %v559, 7
      %v561 = vsub.s32 0, %v560
      %v562 = vrot.slane %v543, %v561
      %v563 = vlaneseq
      %v564 = vshrl.u32 %v563, 7
      %v565 = vsub.s32 0, %v564
      %v566 = vrot.slane %v551, %v565
      %v567 = vlaneseq
      %v568 = vshrl.u32 %v567, 7
      %v569 = vsub.s32 0, %v568
      %v570 = vrot.slane %v553, %v569
      %v571 = vlaneseq
      %v572 = vshrl.u32 %v571, 7
      %v573 = vsub.s32 0, %v572
      %v574 = vrot.slane %v536, %v573
      %v575 = vlaneseq
      %v576 = vshrl.u32 %v575, 7
      %v577 = vsub.s32 0, %v576
      %v578 = vrot.slane %v550, %v577
      %v579 = vlaneseq
      %v580 = vshrl.u32 %v579, 7
      %v581 = vsub.s32 0, %v580
      %v582 = vrot.slane %v552, %v581
      %v583 = vlaneseq
      %v584 = vshrl.u32 %v583, 7
      %v585 = vsub.s32 0, %v584
      %v586 = vrot.slane %v554, %v585
      %v595 = vmul.f32 %v386, %v558
      %v596 = vmul.f32 %v387, %v562
      %v597 = vmul.f32 %v388, %v566
      %v598 = vmul.f32 %v389, %v570
      %v599 = vmul.f32 %v390, %v574
      %v600 = vmul.f32 %v391, %v578
      %v601 = vmul.f32 %v392, %v582
      %v602 = vmul.f32 %v393, %v586
      %v603 = vsel %vm292, %v595, 0.0
      %604 = vadd.xlane.f32.xlu0 %v603
      %v605 = vpop.xlane.xlu0 %604
      %v606 = vsel %vm292, %v596, 0.0
      %607 = vadd.xlane.f32.xlu0 %v606
      %v608 = vpop.xlane.xlu0 %607
      %v609 = vsel %vm292, %v597, 0.0
      %610 = vadd.xlane.f32.xlu0 %v609
      %v611 = vpop.xlane.xlu0 %610
      %v612 = vsel %vm292, %v598, 0.0
      %613 = vadd.xlane.f32.xlu0 %v612
      %v614 = vpop.xlane.xlu0 %613
      %v615 = vsel %vm292, %v599, 0.0
      %616 = vadd.xlane.f32.xlu0 %v615
      %v617 = vpop.xlane.xlu0 %616
      %v618 = vsel %vm292, %v600, 0.0
      %619 = vadd.xlane.f32.xlu0 %v618
      %v620 = vpop.xlane.xlu0 %619
      %v621 = vsel %vm292, %v601, 0.0
      %622 = vadd.xlane.f32.xlu0 %v621
      %v623 = vpop.xlane.xlu0 %622
      %v624 = vsel %vm292, %v602, 0.0
      %625 = vadd.xlane.f32.xlu0 %v624
      %v626 = vpop.xlane.xlu0 %625
      %v627 = vrot.slane %v605, 4
      %v628 = vmax.f32 %v605, %v627
      %v629 = vrot.slane %v628, 2
      %v630 = vmax.f32 %v628, %v629
      %v631 = vrot.slane %v630, 1
      %v632 = vmax.f32 %v630, %v631
      %v633 = vrot.slane %v608, 4
      %v634 = vmax.f32 %v608, %v633
      %v635 = vrot.slane %v634, 2
      %v636 = vmax.f32 %v634, %v635
      %v637 = vrot.slane %v636, 1
      %v638 = vmax.f32 %v636, %v637
      %v639 = vrot.slane %v611, 4
      %v640 = vmax.f32 %v611, %v639
      %v641 = vrot.slane %v640, 2
      %v642 = vmax.f32 %v640, %v641
      %v643 = vrot.slane %v642, 1
      %v644 = vmax.f32 %v642, %v643
      %v645 = vrot.slane %v614, 4
      %v646 = vmax.f32 %v614, %v645
      %v647 = vrot.slane %v646, 2
      %v648 = vmax.f32 %v646, %v647
      %v649 = vrot.slane %v648, 1
      %v650 = vmax.f32 %v648, %v649
      %v651 = vrot.slane %v617, 4
      %v652 = vmax.f32 %v617, %v651
      %v653 = vrot.slane %v652, 2
      %v654 = vmax.f32 %v652, %v653
      %v655 = vrot.slane %v654, 1
      %v656 = vmax.f32 %v654, %v655
      %v657 = vrot.slane %v620, 4
      %v658 = vmax.f32 %v620, %v657
      %v659 = vrot.slane %v658, 2
      %v660 = vmax.f32 %v658, %v659
      %v661 = vrot.slane %v660, 1
      %v662 = vmax.f32 %v660, %v661
      %v663 = vrot.slane %v623, 4
      %v664 = vmax.f32 %v623, %v663
      %v665 = vrot.slane %v664, 2
      %v666 = vmax.f32 %v664, %v665
      %v667 = vrot.slane %v666, 1
      %v668 = vmax.f32 %v666, %v667
      %v669 = vrot.slane %v626, 4
      %v670 = vmax.f32 %v626, %v669
      %v671 = vrot.slane %v670, 2
      %v672 = vmax.f32 %v670, %v671
      %v673 = vrot.slane %v672, 1
      %v674 = vmax.f32 %v672, %v673
      %v675 = vsub.f32 %v605, %v632
      %v676 = vsub.f32 %v608, %v638
      %v677 = vsub.f32 %v611, %v644
      %v678 = vsub.f32 %v614, %v650
      %v679 = vsub.f32 %v617, %v656
      %v680 = vsub.f32 %v620, %v662
      %v681 = vsub.f32 %v623, %v668
      %v682 = vsub.f32 %v626, %v674
      %v683 = vmul.f32 %v675, 1.442695
      %v684 = vpow.pop %v683
      %v685 = vmul.f32 %v676, 1.442695
      %v686 = vpow.pop %v685
      %v687 = vmul.f32 %v677, 1.442695
      %v688 = vpow.pop %v687
      %v689 = vmul.f32 %v678, 1.442695
      %v690 = vpow.pop %v689
      %v691 = vmul.f32 %v679, 1.442695
      %v692 = vpow.pop %v691
      %v693 = vmul.f32 %v680, 1.442695
      %v694 = vpow.pop %v693
      %v695 = vmul.f32 %v681, 1.442695
      %v696 = vpow.pop %v695
      %v697 = vmul.f32 %v682, 1.442695
      %v698 = vpow.pop %v697
      %v699 = vrot.slane %v684, 4
      %v700 = vadd.f32 %v684, %v699
      %v701 = vrot.slane %v700, 2
      %v702 = vadd.f32 %v700, %v701
      %v703 = vrot.slane %v702, 1
      %v704 = vadd.f32 %v702, %v703
      %v705 = vrot.slane %v686, 4
      %v706 = vadd.f32 %v686, %v705
      %v707 = vrot.slane %v706, 2
      %v708 = vadd.f32 %v706, %v707
      %v709 = vrot.slane %v708, 1
      %v710 = vadd.f32 %v708, %v709
      %v711 = vrot.slane %v688, 4
      %v712 = vadd.f32 %v688, %v711
      %v713 = vrot.slane %v712, 2
      %v714 = vadd.f32 %v712, %v713
      %v715 = vrot.slane %v714, 1
      %v716 = vadd.f32 %v714, %v715
      %v717 = vrot.slane %v690, 4
      %v718 = vadd.f32 %v690, %v717
      %v719 = vrot.slane %v718, 2
      %v720 = vadd.f32 %v718, %v719
      %v721 = vrot.slane %v720, 1
      %v722 = vadd.f32 %v720, %v721
      %v723 = vrot.slane %v692, 4
      %v724 = vadd.f32 %v692, %v723
      %v725 = vrot.slane %v724, 2
      %v726 = vadd.f32 %v724, %v725
      %v727 = vrot.slane %v726, 1
      %v728 = vadd.f32 %v726, %v727
      %v729 = vrot.slane %v694, 4
      %v730 = vadd.f32 %v694, %v729
      %v731 = vrot.slane %v730, 2
      %v732 = vadd.f32 %v730, %v731
      %v733 = vrot.slane %v732, 1
      %v734 = vadd.f32 %v732, %v733
      %v735 = vrot.slane %v696, 4
      %v736 = vadd.f32 %v696, %v735
      %v737 = vrot.slane %v736, 2
      %v738 = vadd.f32 %v736, %v737
      %v739 = vrot.slane %v738, 1
      %v740 = vadd.f32 %v738, %v739
      %v741 = vrot.slane %v698, 4
      %v742 = vadd.f32 %v698, %v741
      %v743 = vrot.slane %v742, 2
      %v744 = vadd.f32 %v742, %v743
      %v745 = vrot.slane %v744, 1
      %v746 = vadd.f32 %v744, %v745
      %v747 = vrcp.pop %v704
      %v748 = vrcp.pop %v710
      %v749 = vrcp.pop %v716
      %v750 = vrcp.pop %v722
      %v751 = vrcp.pop %v728
      %v752 = vrcp.pop %v734
      %v753 = vrcp.pop %v740
      %v754 = vrcp.pop %v746
      %v755 = vmul.f32 %v684, %v747
      %v756 = vmul.f32 %v686, %v748
      %v757 = vmul.f32 %v688, %v749
      %v758 = vmul.f32 %v690, %v750
      %v759 = vmul.f32 %v692, %v751
      %v760 = vmul.f32 %v694, %v752
      %v761 = vmul.f32 %v696, %v753
      %v762 = vmul.f32 %v698, %v754
      %v763 = vmul.f32 %v755, %v246
      %v764 = vmul.f32 %v756, %v247
      %v765 = vmul.f32 %v757, %v248
      %v766 = vmul.f32 %v758, %v249
      %v767 = vmul.f32 %v759, %v250
      %v768 = vmul.f32 %v760, %v251
      %v769 = vmul.f32 %v761, %v252
      %v770 = vmul.f32 %v762, %v253
      %v771 = vsel %vm292, %v763, 0.0
      %v772 = vrot.slane %v771, 4
      %v773 = vadd.f32 %v771, %v772
      %v774 = vrot.slane %v773, 2
      %v775 = vadd.f32 %v773, %v774
      %v776 = vrot.slane %v775, 1
      %v777 = vadd.f32 %v775, %v776
      %v778 = vsel %vm292, %v764, 0.0
      %v779 = vrot.slane %v778, 4
      %v780 = vadd.f32 %v778, %v779
      %v781 = vrot.slane %v780, 2
      %v782 = vadd.f32 %v780, %v781
      %v783 = vrot.slane %v782, 1
      %v784 = vadd.f32 %v782, %v783
      %v785 = vsel %vm292, %v765, 0.0
      %v786 = vrot.slane %v785, 4
      %v787 = vadd.f32 %v785, %v786
      %v788 = vrot.slane %v787, 2
      %v789 = vadd.f32 %v787, %v788
      %v790 = vrot.slane %v789, 1
      %v791 = vadd.f32 %v789, %v790
      %v792 = vsel %vm292, %v766, 0.0
      %v793 = vrot.slane %v792, 4
      %v794 = vadd.f32 %v792, %v793
      %v795 = vrot.slane %v794, 2
      %v796 = vadd.f32 %v794, %v795
      %v797 = vrot.slane %v796, 1
      %v798 = vadd.f32 %v796, %v797
      %v799 = vsel %vm292, %v767, 0.0
      %v800 = vrot.slane %v799, 4
      %v801 = vadd.f32 %v799, %v800
      %v802 = vrot.slane %v801, 2
      %v803 = vadd.f32 %v801, %v802
      %v804 = vrot.slane %v803, 1
      %v805 = vadd.f32 %v803, %v804
      %v806 = vsel %vm292, %v768, 0.0
      %v807 = vrot.slane %v806, 4
      %v808 = vadd.f32 %v806, %v807
      %v809 = vrot.slane %v808, 2
      %v810 = vadd.f32 %v808, %v809
      %v811 = vrot.slane %v810, 1
      %v812 = vadd.f32 %v810, %v811
      %v813 = vsel %vm292, %v769, 0.0
      %v814 = vrot.slane %v813, 4
      %v815 = vadd.f32 %v813, %v814
      %v816 = vrot.slane %v815, 2
      %v817 = vadd.f32 %v815, %v816
      %v818 = vrot.slane %v817, 1
      %v819 = vadd.f32 %v817, %v818
      %v820 = vsel %vm292, %v770, 0.0
      %v821 = vrot.slane %v820, 4
      %v822 = vadd.f32 %v820, %v821
      %v823 = vrot.slane %v822, 2
      %v824 = vadd.f32 %v822, %v823
      %v825 = vrot.slane %v824, 1
      %v826 = vadd.f32 %v824, %v825
      %v827 = vmul.f32 %v777, %v777
      %v828 = vmul.f32 %v784, %v784
      %v829 = vmul.f32 %v791, %v791
      %v830 = vmul.f32 %v798, %v798
      %v831 = vmul.f32 %v805, %v805
      %v832 = vmul.f32 %v812, %v812
      %v833 = vmul.f32 %v819, %v819
      %v834 = vmul.f32 %v826, %v826
      %v843 = vsel %vm423, %v828, %v827
      %v844 = vsel %vm426, %v829, %v843
      %v845 = vsel %vm429, %v830, %v844
      %v846 = vsel %vm432, %v831, %v845
      %v847 = vsel %vm435, %v832, %v846
      %v848 = vsel %vm438, %v833, %v847
      %v849 = vsel %vm441, %v834, %v848
      %v851 = vsel %vm292, %v849, 0.0
      %852 = vadd.xlane.f32.xlu0 %v851
      %v853 = vpop.xlane.xlu0 %852
      %v854 = vrsqrt.pop %v853
      %v855 = vmul.f32 %v853, %v854
      %vm856 = vcmp.eq.f32.partialorder %v853, inf
      %v857 = vsel %vm856, %v853, %v855
      %vm858 = vcmp.eq.f32.partialorder %v853, 0.0
      %v859 = vand.u32 %v853, 2147483648
      %v860 = vsel %vm858, %v859, %v857
      %v861 = vadd.f32 %v860, 1e-08
      %v862 = vrcp.pop %v861
      %v864 = vrot.slane %v862, 1
      %v865 = vrot.slane %v862, 2
      %v866 = vrot.slane %v862, 3
      %v867 = vrot.slane %v862, 4
      %v868 = vrot.slane %v862, 5
      %v869 = vrot.slane %v862, 6
      %v870 = vrot.slane %v862, 7
      %v879 = vmul.f32 %v777, %v862
      %v880 = vmul.f32 %v784, %v864
      %v881 = vmul.f32 %v791, %v865
      %v882 = vmul.f32 %v798, %v866
      %v883 = vmul.f32 %v805, %v867
      %v884 = vmul.f32 %v812, %v868
      %v885 = vmul.f32 %v819, %v869
      %v886 = vmul.f32 %v826, %v870
      %vm887 = vcmask 253952
      %888 = vst.msk [vmem:[%s243] sm:$0x1] %vm887, %v879
      %889 = vst.msk [vmem:[%s243 + $0x1] sm:$0x1] %vm887, %v880
      %890 = vst.msk [vmem:[%s243 + $0x2] sm:$0x1] %vm887, %v881
      %891 = vst.msk [vmem:[%s243 + $0x3] sm:$0x1] %vm887, %v882
      %892 = vst.msk [vmem:[%s243 + $0x4] sm:$0x1] %vm887, %v883
      %893 = vst.msk [vmem:[%s243 + $0x5] sm:$0x1] %vm887, %v884
      %894 = vst.msk [vmem:[%s243 + $0x6] sm:$0x1] %vm887, %v885
      %895 = vst.msk [vmem:[%s243 + $0x7] sm:$0x1] %vm887, %v886
      %s896 = smul.u32 8, %s16
      %p897 = scmp.lt.s32.totalorder %s896, 63
      %s898 = scalar_select %p897, %s896, 63
      %s899 = scalar_lea.vmem %s5, %s898
      // Predicated region
      $region41: #{tpu_custom_call.1} parent=39 // pred_check
        %p900 = pneg %p149
      $region42: #{tpu_custom_call.1} parent=39 // pred_check_branch
        %902 = sbr.rel (%p900) target = $region44
      $region43: #{tpu_custom_call.1} parent=39 // pred_region
        %s903 = smul.u32 8, %s16
      $region44: #{tpu_custom_call.1} parent=39 // pred_fallthru
        _
    $region40: #{tpu_custom_call.1} parent=5 // pred_fallthru
      _
    %p904 = scmp.le.s32.totalorder 2, %s11
    // Predicated region
    $region45: #{tpu_custom_call.1} parent=5 // pred_check
      %p905 = pneg %p904
    $region46: #{tpu_custom_call.1} parent=5 // pred_check_branch
      %907 = sbr.rel (%p905) target = $region48
    $region47: #{tpu_custom_call.1} parent=5 // pred_region
      %s908 = ssub.s32 %s11, 2
      // Predicated region
      $region49: #{tpu_custom_call.1} parent=47 // pred_check
        %p909 = pneg %p155
      $region50: #{tpu_custom_call.1} parent=47 // pred_check_branch
        %911 = sbr.rel (%p909) target = $region52
      $region51: #{tpu_custom_call.1} parent=47 // pred_region
        %s912 = smul.u32 8, %s17
        %p913 = scmp.lt.s32.totalorder %s912, 63
        %s914 = scalar_select %p913, %s912, 63
        %s915 = scalar_lea.vmem %s5, %s914
      $region52: #{tpu_custom_call.1} parent=47 // pred_fallthru
        _
    $region48: #{tpu_custom_call.1} parent=5 // pred_fallthru
      _
  $region6: #{tpu_custom_call.1} parent=0 // loop_footer
    %s15 = sadd.s32 1, %s11
  $region7: #{tpu_custom_call.1} parent=0 // loop_footer_branch
    %10 = sbr.rel target = $region3
  $region8: #{tpu_custom_call.1} parent=0 // loop_exit
    _

</llo_original>
